<compile_context>
chip_gen: v5e
topology: v5e:2x2
jax: 0.10.0
libtpu: 0.0.40
codegen_flags: <defaults>
</compile_context>

<pallas_src>
import jax
import jax.numpy as jnp
from jax.experimental import pallas as pl
from jax.experimental.pallas import tpu as pltpu


IN_FEATURES = 15
HIDDEN = 10
OUT_FEATURES = 1

# Batch-tile selection (lane axis of the compute, sublane axis of the x DMA):
#   - never below 128 (lane-dense output tiles),
#   - cap at 16384 (a (16384, 15) f32 x block is ~1 MiB; double-buffered
#     ~2 MiB -- comfortably inside even v7x's 32 MiB scoped VMEM default),
#   - aim for >= ~8 grid steps so the pipeline stays deep and v7x's two
#     TensorCores both get tiles from the "parallel" batch axis.
_MIN_TB = 128
_MAX_TB = 16384
_TARGET_TILES = 8


def _pick_batch_tile(batch):
    tb = -(-batch // _TARGET_TILES)            # cdiv(batch, target #tiles)
    tb = max(_MIN_TB, min(_MAX_TB, tb))
    return -(-tb // 128) * 128                 # round up to a lane multiple


def _net_kernel(x_ref, w1_ref, b1_ref, w2_ref, b2_ref, o_ref):
    # x_ref:  (TB, 15)   w1_ref: (10, 15)   b1_ref: (10, 1)
    # w2_ref: (10, 1)    b2_ref: (1, 1)     o_ref:  (1, TB)
    #
    # fc1 + bias + ReLU:  contract the feature dim (dim 1 of both operands)
    #   -> h = w1 @ x.T : (10, TB), batch on lanes, f32 accumulation.
    # The implicit in-kernel transpose of x goes to the XLU and hides under
    # the x DMA stream (the kernel is HBM-bound).
    h = jax.lax.dot_general(
        w1_ref[...], x_ref[...],
        dimension_numbers=(((1,), (1,)), ((), ())),
        preferred_element_type=jnp.float32,
        precision=jax.lax.Precision.HIGHEST,   # exact f32; MXU has huge slack
    )
    h = jnp.maximum(h + b1_ref[...], 0.0)      # bias broadcast over lanes

    # fc2 (out_features == 1) on VPU + XLU: weighted sum over the hidden
    # (sublane) axis -- avoids an N=1, K=10 MXU pass.  Free filler under DMA.
    y = jnp.sum(h * w2_ref[...], axis=0, keepdims=True) + b2_ref[...]  # (1,TB)

    o_ref[...] = y.astype(o_ref.dtype)


def net_forward(x, w1, b1, w2, b2, *, tb=None, compute_dtype=None):
    """Forward pass matching PyTorch `Net`.

    x:  (B, 15)               -- natural row-major layout, consumed directly
    w1: (10, 15), b1: (10,)   -- PyTorch nn.Linear(15, 10) layout
    w2: (1, 10),  b2: (1,)    -- PyTorch nn.Linear(10, 1) layout
    compute_dtype: optionally bfloat16 for the x / w1 streams (f32 accumulate
        is kept).  Only a win if the caller already holds x in that dtype.
    returns (B, 1) float32
    """
    B, F = x.shape
    assert F == IN_FEATURES

    if compute_dtype is not None:
        x = x.astype(compute_dtype)
        w1 = w1.astype(compute_dtype)

    if tb is None:
        tb = _pick_batch_tile(B)
    n_tiles = pl.cdiv(B, tb)                   # ragged last tile handled by
                                               # Pallas OOB masking -- no pad

    b1_col = b1.reshape(HIDDEN, 1).astype(jnp.float32)
    w2_col = w2.reshape(HIDDEN, OUT_FEATURES).astype(jnp.float32)  # (10, 1)
    b2_col = b2.reshape(OUT_FEATURES, 1).astype(jnp.float32)

    x_bytes = int(B) * IN_FEATURES * jnp.dtype(x.dtype).itemsize
    param_bytes = (HIDDEN * IN_FEATURES + HIDDEN + HIDDEN + OUT_FEATURES) * 4
    cost = pl.CostEstimate(
        flops=2 * B * IN_FEATURES * HIDDEN + 2 * B * HIDDEN * OUT_FEATURES,
        transcendentals=0,
        bytes_accessed=x_bytes + B * OUT_FEATURES * 4 + param_bytes,
    )

    out = pl.pallas_call(
        _net_kernel,
        out_shape=jax.ShapeDtypeStruct((OUT_FEATURES, B), jnp.float32),
        grid_spec=pl.GridSpec(
            grid=(n_tiles,),
            in_specs=[
                # x tile marches along the batch axis; feature dim (=15) is
                # the full array extent so the (8,128) rule is satisfied.
                # (If DMA latency is still exposed on v7x at moderate TB,
                #  pipeline_mode=pl.Buffered(3) here deepens the pipeline.)
                pl.BlockSpec((tb, IN_FEATURES), lambda i: (i, 0)),
                # Weights / biases: constant block index -> resident in VMEM.
                pl.BlockSpec((HIDDEN, IN_FEATURES), lambda i: (0, 0)),
                pl.BlockSpec((HIDDEN, 1), lambda i: (0, 0)),
                pl.BlockSpec((HIDDEN, OUT_FEATURES), lambda i: (0, 0)),
                pl.BlockSpec((OUT_FEATURES, 1), lambda i: (0, 0)),
            ],
            out_specs=pl.BlockSpec((OUT_FEATURES, tb), lambda i: (0, i)),
        ),
        compiler_params=pltpu.CompilerParams(
            dimension_semantics=("parallel",),   # megacore sharding on v7x
        ),
        cost_estimate=cost,
    )(x, w1, b1_col, w2_col, b2_col)

    # (1, B) -> (B, 1): free layout change, no padded slice, no extra copy.
    return out.T


def init_params(key):
    """Deterministic init matching nn.Linear's layouts and uniform bounds."""
    k1, k2, k3, k4 = jax.random.split(key, 4)
    bound1 = 1.0 / (IN_FEATURES ** 0.5)
    w1 = jax.random.uniform(k1, (HIDDEN, IN_FEATURES), jnp.float32,
                            minval=-bound1, maxval=bound1)
    b1 = jax.random.uniform(k2, (HIDDEN,), jnp.float32,
                            minval=-bound1, maxval=bound1)
    bound2 = 1.0 / (HIDDEN ** 0.5)
    w2 = jax.random.uniform(k3, (OUT_FEATURES, HIDDEN), jnp.float32,
                            minval=-bound2, maxval=bound2)
    b2 = jax.random.uniform(k4, (OUT_FEATURES,), jnp.float32,
                            minval=-bound2, maxval=bound2)
    return w1, b1, w2, b2


def reference_forward(x, w1, b1, w2, b2):
    hp = jax.lax.Precision.HIGHEST
    h = jnp.maximum(jnp.dot(x, w1.T, precision=hp) + b1, 0.0)
    return jnp.dot(h, w2.T, precision=hp) + b2


if __name__ == "__main__":
    key = jax.random.PRNGKey(0)
    kx, kp = jax.random.split(key)

    # 300 rows -> 3 batch tiles of 128 incl. a ragged last tile: exercises the
    # grid, the double-buffered x pipeline, and Pallas OOB masking (no pad).
    B = 300
    x = jax.random.normal(kx, (B, IN_FEATURES), jnp.float32)
    w1, b1, w2, b2 = init_params(kp)

    fwd = jax.jit(net_forward)
    out = jax.block_until_ready(fwd(x, w1, b1, w2, b2))

    ref = reference_forward(x, w1, b1, w2, b2)
    assert out.shape == (B, OUT_FEATURES)
    # f32 path is exact math; only summation-order differences remain.
    # (If compute_dtype=bfloat16 is used, relax this tolerance.)
    assert jnp.allclose(out, ref, atol=1e-4, rtol=1e-4), \
        float(jnp.max(jnp.abs(out - ref)))

    print("KERNEL_OK")
</pallas_src>

<mosaic_0001>
module attributes {stable_mosaic.version = 11 : i64} {
  func.func @_net_kernel(%arg0: i32, %arg1: memref<128x15xf32, #tpu.memory_space<vmem>>, %arg2: memref<10x15xf32, #tpu.memory_space<vmem>>, %arg3: memref<10x1xf32, #tpu.memory_space<vmem>>, %arg4: memref<10x1xf32, #tpu.memory_space<vmem>>, %arg5: memref<1x1xf32, #tpu.memory_space<vmem>>, %arg6: memref<1x128xf32, #tpu.memory_space<vmem>>) attributes {dimension_semantics = [#tpu.dimension_semantics<parallel>], iteration_bounds = array<i64: 3>, scalar_prefetch = 0 : i64, scratch_operands = 0 : i64, tpu.core_type = #tpu.core_type<tc>, window_params = [{transform_indices = @transform_0, window_bounds = array<i64: 128, 15>}, {pipeline_mode = #tpu.pipeline_mode<synchronous>, transform_indices = @transform_1, window_bounds = array<i64: 10, 15>}, {pipeline_mode = #tpu.pipeline_mode<synchronous>, transform_indices = @transform_2, window_bounds = array<i64: 10, 1>}, {pipeline_mode = #tpu.pipeline_mode<synchronous>, transform_indices = @transform_3, window_bounds = array<i64: 10, 1>}, {pipeline_mode = #tpu.pipeline_mode<synchronous>, transform_indices = @transform_4, window_bounds = array<i64: 1, 1>}, {transform_indices = @transform_5, window_bounds = array<i64: 1, 128>}]} {
    %c0 = arith.constant 0 : index
    %c0_0 = arith.constant 0 : index
    %0 = vector.load %arg2[%c0, %c0_0] : memref<10x15xf32, #tpu.memory_space<vmem>>, vector<10x15xf32>
    %c0_1 = arith.constant 0 : index
    %c0_2 = arith.constant 0 : index
    %1 = vector.load %arg1[%c0_1, %c0_2] : memref<128x15xf32, #tpu.memory_space<vmem>>, vector<128x15xf32>
    %cst = arith.constant dense<0.000000e+00> : vector<10x128xf32>
    %2 = tpu.matmul %0, %1, %cst {dimension_numbers = #tpu.dot_dimension_numbers<[1], [1], [0], [0], [0, 0, 1, 0], [], []>, precision = #tpu.contract_precision<fp32>} : vector<10x15xf32>, vector<128x15xf32>, vector<10x128xf32> -> vector<10x128xf32>
    %c0_3 = arith.constant 0 : index
    %c0_4 = arith.constant 0 : index
    %3 = vector.load %arg3[%c0_3, %c0_4] : memref<10x1xf32, #tpu.memory_space<vmem>>, vector<10x1xf32>
    %4 = vector.broadcast %3 : vector<10x1xf32> to vector<10x128xf32>
    %5 = arith.addf %2, %4 : vector<10x128xf32>
    %cst_5 = arith.constant 0.000000e+00 : f32
    %6 = vector.broadcast %cst_5 : f32 to vector<10x128xf32>
    %7 = arith.maximumf %5, %6 : vector<10x128xf32>
    %c0_6 = arith.constant 0 : index
    %c0_7 = arith.constant 0 : index
    %8 = vector.load %arg4[%c0_6, %c0_7] : memref<10x1xf32, #tpu.memory_space<vmem>>, vector<10x1xf32>
    %9 = vector.broadcast %8 : vector<10x1xf32> to vector<10x128xf32>
    %10 = arith.mulf %7, %9 : vector<10x128xf32>
    %cst_8 = arith.constant dense<0.000000e+00> : vector<128xf32>
    %11 = vector.multi_reduction <add>, %10, %cst_8 [0] : vector<10x128xf32> to vector<128xf32>
    %12 = vector.shape_cast %11 : vector<128xf32> to vector<1x128xf32>
    %c0_9 = arith.constant 0 : index
    %c0_10 = arith.constant 0 : index
    %13 = vector.load %arg5[%c0_9, %c0_10] : memref<1x1xf32, #tpu.memory_space<vmem>>, vector<1x1xf32>
    %14 = vector.broadcast %13 : vector<1x1xf32> to vector<1x128xf32>
    %15 = arith.addf %12, %14 : vector<1x128xf32>
    %c0_11 = arith.constant 0 : index
    %c0_12 = arith.constant 0 : index
    %16 = vector.load %arg6[%c0_11, %c0_12] : memref<1x128xf32, #tpu.memory_space<vmem>>, vector<1x128xf32>
    tpu.vector_store %arg6[%c0_11, %c0_12], %15 {strides = array<i32>} : memref<1x128xf32, #tpu.memory_space<vmem>>, vector<1x128xf32>,
    return
  }
  func.func @transform_0(%arg0: i32) -> (i32, i32) {
    %c0_i32 = arith.constant 0 : i32
    %c0_i32_0 = arith.constant 0 : i32
    return %arg0, %c0_i32 : i32, i32
  }
  func.func @transform_1(%arg0: i32) -> (i32, i32) {
    %c0_i32 = arith.constant 0 : i32
    %c0_i32_0 = arith.constant 0 : i32
    %c0_i32_1 = arith.constant 0 : i32
    return %c0_i32, %c0_i32_0 : i32, i32
  }
  func.func @transform_2(%arg0: i32) -> (i32, i32) {
    %c0_i32 = arith.constant 0 : i32
    %c0_i32_0 = arith.constant 0 : i32
    %c0_i32_1 = arith.constant 0 : i32
    return %c0_i32, %c0_i32_0 : i32, i32
  }
  func.func @transform_3(%arg0: i32) -> (i32, i32) {
    %c0_i32 = arith.constant 0 : i32
    %c0_i32_0 = arith.constant 0 : i32
    %c0_i32_1 = arith.constant 0 : i32
    return %c0_i32, %c0_i32_0 : i32, i32
  }
  func.func @transform_4(%arg0: i32) -> (i32, i32) {
    %c0_i32 = arith.constant 0 : i32
    %c0_i32_0 = arith.constant 0 : i32
    %c0_i32_1 = arith.constant 0 : i32
    return %c0_i32, %c0_i32_0 : i32, i32
  }
  func.func @transform_5(%arg0: i32) -> (i32, i32) {
    %c0_i32 = arith.constant 0 : i32
    %c0_i32_0 = arith.constant 0 : i32
    return %c0_i32, %arg0 : i32, i32
  }
}

</mosaic_0001>

<llo_original>
// kernel: net_forward.1
$region0: #{net_forward.1}
  #allocation0 [shape = 'u32[]', space=smem, size = 0x4, offset = 0x4, fixed_abs, tag = 'smem constant byte address 0x4 - core index']
  #allocation1 [shape = 'u32[72,128]{1,0:T(1,128)}', space=vmem, size = 0x9000, scoped, tag = 'internal scratch']
  #allocation2 [shape = 'f32[1,1]{1,0:T(1,128)S(1)}', space=vmem, size = 0x200, scoped, tag = 'scoped memory for net_forward.1']
  %s0 = inlined_call_operand.vmem [shape: f32[300,15], index: 0, kind: input, shape index: {}]
  %s1 = inlined_call_operand.vmem [shape: f32[10,15], index: 1, kind: input, shape index: {}]
  %s2 = inlined_call_operand.vmem [shape: f32[10,1], index: 2, kind: input, shape index: {}]
  %s3 = inlined_call_operand.vmem [shape: f32[10,1], index: 3, kind: input, shape index: {}]
  %s4 = inlined_call_operand.<no memory space> [shape: f32[1,1], index: 4, kind: input, shape index: {}]
  %s5 = inlined_call_operand.hbm [shape: f32[1,300], index: 5, kind: output, shape index: {}]
  %s6 = sld [smem:[#allocation0]]
  $region53: #{net_forward.1} parent=0
    _
  %s8 = ssub.s32 1, %s6
  %s9 = scalar_select 0, %s8, %s6
  %v10 = vstv %s4
  %11 = vst [vmem:[#allocation2] sm:$0x1] %v10
  $region1: #{net_forward.1} parent=0
    #allocation3 [shape = 'u8[1024]{0}', space=vmem, size = 0x400, scoped, tag = 'output window, operand 0']
    #allocation4 [shape = 's32[2]{0}', space=sflag, size = 0x8, scoped, tag = 'scoped memory for net_forward.1']
    %12 = vsyncpa [#allocation4], 0
    %s13 = scalar_lea.sflag [#allocation4], 1
    %14 = vsyncpa %s13, 0
    loop: start=0, step=1, limit=5
    $region2: #{net_forward.1} parent=1 // loop_pre_header
      _
    $region3: #{net_forward.1} parent=1 // loop_header
      %s16 = sphi 0, %s20
      %p17 = scmp.ge.s32.totalorder %s16, 5
      %s26 = sphi 0, %s28
      %s29 = sphi 0, %s26
      %s30 = sphi 0, %s29
      %s46 = sphi 0, %s30
      %s50 = sphi 0, %s50
      %s52 = sphi 0, %s50
      %s53 = sphi 0, %s52
      %s67 = sphi 0, %s53
      %s71 = sphi 0, %s71
      %s73 = sphi 0, %s71
      %s74 = sphi 0, %s73
      %s88 = sphi 0, %s74
      %s92 = sphi 0, %s92
      %s94 = sphi 0, %s92
      %s95 = sphi 0, %s94
      %s109 = sphi 0, %s95
      %s113 = sphi 0, %s113
      %s115 = sphi 0, %s113
      %s116 = sphi 0, %s115
      %s130 = sphi 0, %s116
      %s136 = sphi 0, %s138
      %s139 = sphi 0, %s136
      %s140 = sphi 0, %s139
      %s156 = sphi 0, %s140
    $region4: #{net_forward.1} parent=1 // loop_header_branch
      %19 = sbr.rel (%p17) target = $region8
    $region5: #{net_forward.1} parent=1 // loop_body
      %s21 = ssub.s32 %s16, 1
      %s22 = ssub.s32 %s16, 2
      %s23 = sadd.s32 %s16, 1
      %s24 = ssub.s32 %s16, %s23
      %p25 = scmp.eq.s32.totalorder %s24, 0
      %s27 = sadd.s32 %s26, 1
      %s28 = scalar_select %p25, %s26, %s27
      %p31 = pneg %p25
      %p32 = scmp.eq.s32.totalorder %s16, 2
      %p33 = por %p31, %p32
      %p34 = scmp.ne.s32.totalorder %s26, %s29
      %p35 = scmp.eq.s32.totalorder %s16, 0
      %p36 = por %p34, %p35
      %p37 = scmp.ne.s32.totalorder %s26, %s29
      %p38 = scmp.eq.s32.totalorder %s21, 2
      %p39 = por %p37, %p38
      %p40 = scmp.ne.s32.totalorder %s29, %s30
      %p41 = scmp.eq.s32.totalorder %s21, 0
      %p42 = por %p40, %p41
      %p43 = scmp.ne.s32.totalorder %s29, %s30
      %p44 = scmp.eq.s32.totalorder %s22, 2
      %p45 = por %p43, %p44
      %p47 = scmp.ne.s32.totalorder %s30, %s46
      %p48 = scmp.eq.s32.totalorder %s22, 0
      %p49 = por %p47, %p48
      %s51 = sadd.s32 %s50, 1
      %p54 = scmp.eq.s32.totalorder %s16, 2
      %p55 = scmp.ne.s32.totalorder %s50, %s52
      %p56 = scmp.eq.s32.totalorder %s16, 0
      %p57 = por %p55, %p56
      %p58 = scmp.ne.s32.totalorder %s50, %s52
      %p59 = scmp.eq.s32.totalorder %s21, 2
      %p60 = por %p58, %p59
      %p61 = scmp.ne.s32.totalorder %s52, %s53
      %p62 = scmp.eq.s32.totalorder %s21, 0
      %p63 = por %p61, %p62
      %p64 = scmp.ne.s32.totalorder %s52, %s53
      %p65 = scmp.eq.s32.totalorder %s22, 2
      %p66 = por %p64, %p65
      %p68 = scmp.ne.s32.totalorder %s53, %s67
      %p69 = scmp.eq.s32.totalorder %s22, 0
      %p70 = por %p68, %p69
      %s72 = sadd.s32 %s71, 1
      %p75 = scmp.eq.s32.totalorder %s16, 2
      %p76 = scmp.ne.s32.totalorder %s71, %s73
      %p77 = scmp.eq.s32.totalorder %s16, 0
      %p78 = por %p76, %p77
      %p79 = scmp.ne.s32.totalorder %s71, %s73
      %p80 = scmp.eq.s32.totalorder %s21, 2
      %p81 = por %p79, %p80
      %p82 = scmp.ne.s32.totalorder %s73, %s74
      %p83 = scmp.eq.s32.totalorder %s21, 0
      %p84 = por %p82, %p83
      %p85 = scmp.ne.s32.totalorder %s73, %s74
      %p86 = scmp.eq.s32.totalorder %s22, 2
      %p87 = por %p85, %p86
      %p89 = scmp.ne.s32.totalorder %s74, %s88
      %p90 = scmp.eq.s32.totalorder %s22, 0
      %p91 = por %p89, %p90
      %s93 = sadd.s32 %s92, 1
      %p96 = scmp.eq.s32.totalorder %s16, 2
      %p97 = scmp.ne.s32.totalorder %s92, %s94
      %p98 = scmp.eq.s32.totalorder %s16, 0
      %p99 = por %p97, %p98
      %p100 = scmp.ne.s32.totalorder %s92, %s94
      %p101 = scmp.eq.s32.totalorder %s21, 2
      %p102 = por %p100, %p101
      %p103 = scmp.ne.s32.totalorder %s94, %s95
      %p104 = scmp.eq.s32.totalorder %s21, 0
      %p105 = por %p103, %p104
      %p106 = scmp.ne.s32.totalorder %s94, %s95
      %p107 = scmp.eq.s32.totalorder %s22, 2
      %p108 = por %p106, %p107
      %p110 = scmp.ne.s32.totalorder %s95, %s109
      %p111 = scmp.eq.s32.totalorder %s22, 0
      %p112 = por %p110, %p111
      %s114 = sadd.s32 %s113, 1
      %p117 = scmp.eq.s32.totalorder %s16, 2
      %p118 = scmp.ne.s32.totalorder %s113, %s115
      %p119 = scmp.eq.s32.totalorder %s16, 0
      %p120 = por %p118, %p119
      %p121 = scmp.ne.s32.totalorder %s113, %s115
      %p122 = scmp.eq.s32.totalorder %s21, 2
      %p123 = por %p121, %p122
      %p124 = scmp.ne.s32.totalorder %s115, %s116
      %p125 = scmp.eq.s32.totalorder %s21, 0
      %p126 = por %p124, %p125
      %p127 = scmp.ne.s32.totalorder %s115, %s116
      %p128 = scmp.eq.s32.totalorder %s22, 2
      %p129 = por %p127, %p128
      %p131 = scmp.ne.s32.totalorder %s116, %s130
      %p132 = scmp.eq.s32.totalorder %s22, 0
      %p133 = por %p131, %p132
      %s134 = ssub.s32 %s16, %s23
      %p135 = scmp.eq.s32.totalorder %s134, 0
      %s137 = sadd.s32 %s136, 1
      %s138 = scalar_select %p135, %s136, %s137
      %p141 = pneg %p135
      %p142 = scmp.eq.s32.totalorder %s16, 2
      %p143 = por %p141, %p142
      %p144 = scmp.ne.s32.totalorder %s136, %s139
      %p145 = scmp.eq.s32.totalorder %s16, 0
      %p146 = por %p144, %p145
      %p147 = scmp.ne.s32.totalorder %s136, %s139
      %p148 = scmp.eq.s32.totalorder %s21, 2
      %p149 = por %p147, %p148
      %p150 = scmp.ne.s32.totalorder %s139, %s140
      %p151 = scmp.eq.s32.totalorder %s21, 0
      %p152 = por %p150, %p151
      %p153 = scmp.ne.s32.totalorder %s139, %s140
      %p154 = scmp.eq.s32.totalorder %s22, 2
      %p155 = por %p153, %p154
      %p157 = scmp.ne.s32.totalorder %s140, %s156
      %p158 = scmp.eq.s32.totalorder %s22, 0
      %p159 = por %p157, %p158
      %p160 = scmp.le.s32.totalorder 1, %s16
      %p161 = scmp.lt.s32.totalorder %s16, 4
      %p162 = pnand %p160, %p161
      %p163 = pneg %p162
      // Predicated region
      $region9: #{net_forward.1} parent=5 // pred_check
        _
      $region10: #{net_forward.1} parent=5 // pred_check_branch
        %165 = sbr.rel (%p162) target = $region12
      $region11: #{net_forward.1} parent=5 // pred_region
        %s166 = ssub.s32 %s16, 1
        // Predicated region
        $region13: #{net_forward.1} parent=11 // pred_check
          %p167 = pneg %p63
        $region14: #{net_forward.1} parent=11 // pred_check_branch
          %169 = sbr.rel (%p167) target = $region16
        $region15: #{net_forward.1} parent=11 // pred_region
          _
        $region16: #{net_forward.1} parent=11 // pred_fallthru
          _
        // Predicated region
        $region17: #{net_forward.1} parent=11 // pred_check
          %p170 = pneg %p84
        $region18: #{net_forward.1} parent=11 // pred_check_branch
          %172 = sbr.rel (%p170) target = $region20
        $region19: #{net_forward.1} parent=11 // pred_region
          _
        $region20: #{net_forward.1} parent=11 // pred_fallthru
          _
        // Predicated region
        $region21: #{net_forward.1} parent=11 // pred_check
          %p173 = pneg %p105
        $region22: #{net_forward.1} parent=11 // pred_check_branch
          %175 = sbr.rel (%p173) target = $region24
        $region23: #{net_forward.1} parent=11 // pred_region
          _
        $region24: #{net_forward.1} parent=11 // pred_fallthru
          _
        // Predicated region
        $region25: #{net_forward.1} parent=11 // pred_check
          %p176 = pneg %p126
        $region26: #{net_forward.1} parent=11 // pred_check_branch
          %178 = sbr.rel (%p176) target = $region28
        $region27: #{net_forward.1} parent=11 // pred_region
          _
        $region28: #{net_forward.1} parent=11 // pred_fallthru
          _
      $region12: #{net_forward.1} parent=5 // pred_fallthru
        _
      %p179 = scmp.lt.s32.totalorder %s16, 3
      // Predicated region
      $region29: #{net_forward.1} parent=5 // pred_check
        %p180 = pneg %p179
      $region30: #{net_forward.1} parent=5 // pred_check_branch
        %182 = sbr.rel (%p180) target = $region32
      $region31: #{net_forward.1} parent=5 // pred_region
        // Predicated region
        $region33: #{net_forward.1} parent=31 // pred_check
          %p183 = pneg %p36
        $region34: #{net_forward.1} parent=31 // pred_check_branch
          %185 = sbr.rel (%p183) target = $region36
        $region35: #{net_forward.1} parent=31 // pred_region
          %s186 = smul.u32 16, %s16
          %s187 = ssub.s32 38, %s186
          %p188 = scmp.lt.s32.totalorder %s187, 16
          %s189 = scalar_select %p188, %s187, 16
          %s190 = smul.u32 8, %s189
          %p191 = scmp.lt.s32.totalorder %s186, 37
          %s192 = scalar_select %p191, %s186, 37
          %s193 = smul.addr %s192, 8
          %s194 = scalar_lea.vmem %s0, %s193
          %s195 = smul.u32 16, %s16
          %s196 = ssub.s32 38, %s195
          %p197 = scmp.lt.s32.totalorder %s196, 16
          %s198 = scalar_select %p197, %s196, 16
          %s199 = smul.u32 8, %s198
        $region36: #{net_forward.1} parent=31 // pred_fallthru
          _
      $region32: #{net_forward.1} parent=5 // pred_fallthru
        _
      %p200 = scmp.le.s32.totalorder 1, %s16
      %p201 = scmp.lt.s32.totalorder %s16, 4
      %p202 = pnand %p200, %p201
      %p203 = pneg %p202
      // Predicated region
      $region37: #{net_forward.1} parent=5 // pred_check
        _
      $region38: #{net_forward.1} parent=5 // pred_check_branch
        %205 = sbr.rel (%p202) target = $region40
      $region39: #{net_forward.1} parent=5 // pred_region
        %s206 = ssub.s32 %s16, 1
        %s207 = smul.u32 16, %s21
        %s208 = ssub.s32 38, %s207
        %p209 = scmp.lt.s32.totalorder %s208, 16
        %s210 = scalar_select %p209, %s208, 16
        %s211 = smul.u32 8, %s210
        %p212 = scmp.lt.s32.totalorder %s207, 37
        %s213 = scalar_select %p212, %s207, 37
        %s214 = smul.addr %s213, 8
        %s215 = scalar_lea.vmem %s0, %s214
        %p216 = pneg %p42
        %p217 = pneg %p39
        %p218 = pneg %p63
        %p219 = pneg %p60
        %p220 = pneg %p84
        %p221 = pneg %p81
        %p222 = pneg %p105
        %p223 = pneg %p102
        %p224 = pneg %p126
        %p225 = pneg %p123
        %p226 = pneg %p152
        %p227 = pneg %p149
        %s228 = sand.u32 %s139, 1
        %s229 = scalar_lea.sflag [#allocation4], %s228
        %s230 = sand.u32 %s139, 1
        %s231 = scalar_lea.vmem [#allocation3], %s230
        %s232 = smul.u32 16, %s21
        %s233 = ssub.s32 38, %s232
        %p234 = scmp.lt.s32.totalorder %s233, 16
        %s235 = scalar_select %p234, %s233, 16
        %s236 = smul.u32 8, %s235
        %p237 = scmp.lt.s32.totalorder %s232, 37
        %s238 = scalar_select %p237, %s232, 37
        %s239 = smul.addr %s238, 8
        %s240 = scalar_lea.vmem %s0, %s239
        %s241 = smul.u32 16, %s21
        %s242 = ssub.s32 38, %s241
        %p243 = scmp.lt.s32.totalorder %s242, 16
        %s244 = scalar_select %p243, %s242, 16
        %s245 = smul.u32 8, %s244
        %v246 = vld [vmem:[%s1] sm:$0xff]
        %v247 = vld [vmem:[%s1 + $0x8] sm:$0x3]
        %v248 = vld [vmem:[%s240] sm:$0xff]
        %v249 = vld [vmem:[%s240 + $0x8] sm:$0xff]
        %v250 = vld [vmem:[%s240 + $0x10] sm:$0xff]
        %v251 = vld [vmem:[%s240 + $0x18] sm:$0xff]
        %v252 = vld [vmem:[%s240 + $0x20] sm:$0xff]
        %v253 = vld [vmem:[%s240 + $0x28] sm:$0xff]
        %v254 = vld [vmem:[%s240 + $0x30] sm:$0xff]
        %v255 = vld [vmem:[%s240 + $0x38] sm:$0xff]
        %v256 = vld [vmem:[%s240 + $0x40] sm:$0xff]
        %v257 = vld [vmem:[%s240 + $0x48] sm:$0xff]
        %v258 = vld [vmem:[%s240 + $0x50] sm:$0xff]
        %v259 = vld [vmem:[%s240 + $0x58] sm:$0xff]
        %v260 = vld [vmem:[%s240 + $0x60] sm:$0xff]
        %v261 = vld [vmem:[%s240 + $0x68] sm:$0xff]
        %v262 = vld [vmem:[%s240 + $0x70] sm:$0xff]
        %v263 = vld [vmem:[%s240 + $0x78] sm:$0xff]
        %v264 = vld [vmem:[%s2] sm:$0xff]
        %v265 = vld [vmem:[%s2 + $0x8] sm:$0x3]
        %267 = vset.pattern.permute.xlu0 0
        %268 = vperm.xlu0 %267, %v264
        %v269 = vpop.permute.xlu0 %268
        %272 = vset.pattern.permute.xlu0 0
        %273 = vperm.xlu0 %272, %v265
        %v274 = vpop.permute.xlu0 %273
        %vm276 = vcmask 121856
        %v278 = vsel %vm276, %v246, 0
        %v281 = vsel %vm276, %v247, 0
        %v284 = vsel %vm276, %v248, 0
        %v287 = vsel %vm276, %v249, 0
        %v290 = vsel %vm276, %v250, 0
        %v293 = vsel %vm276, %v251, 0
        %v296 = vsel %vm276, %v252, 0
        %v299 = vsel %vm276, %v253, 0
        %v302 = vsel %vm276, %v254, 0
        %v305 = vsel %vm276, %v255, 0
        %v308 = vsel %vm276, %v256, 0
        %v311 = vsel %vm276, %v257, 0
        %v314 = vsel %vm276, %v258, 0
        %v317 = vsel %vm276, %v259, 0
        %v320 = vsel %vm276, %v260, 0
        %v323 = vsel %vm276, %v261, 0
        %v326 = vsel %vm276, %v262, 0
        %v329 = vsel %vm276, %v263, 0
        %v331 = vand.u32 %v329, 4294901760
        %332 = vmatpush.xpose.msra.mxu0 %v331
        %v333 = vand.u32 %v326, 4294901760
        %334 = vmatpush.xpose.msra.mxu0 %v333
        %v335 = vand.u32 %v323, 4294901760
        %336 = vmatpush.xpose.msra.mxu0 %v335
        %v337 = vand.u32 %v320, 4294901760
        %338 = vmatpush.xpose.msra.mxu0 %v337
        %v339 = vand.u32 %v317, 4294901760
        %340 = vmatpush.xpose.msra.mxu0 %v339
        %v341 = vand.u32 %v314, 4294901760
        %342 = vmatpush.xpose.msra.mxu0 %v341
        %v343 = vand.u32 %v311, 4294901760
        %344 = vmatpush.xpose.msra.mxu0 %v343
        %v345 = vand.u32 %v308, 4294901760
        %346 = vmatpush.xpose.msra.mxu0 %v345
        %v347 = vand.u32 %v305, 4294901760
        %348 = vmatpush.xpose.msra.mxu0 %v347
        %v349 = vand.u32 %v302, 4294901760
        %350 = vmatpush.xpose.msra.mxu0 %v349
        %v351 = vand.u32 %v299, 4294901760
        %352 = vmatpush.xpose.msra.mxu0 %v351
        %v353 = vand.u32 %v296, 4294901760
        %354 = vmatpush.xpose.msra.mxu0 %v353
        %v355 = vand.u32 %v293, 4294901760
        %356 = vmatpush.xpose.msra.mxu0 %v355
        %v357 = vand.u32 %v290, 4294901760
        %358 = vmatpush.xpose.msra.mxu0 %v357
        %v359 = vand.u32 %v287, 4294901760
        %360 = vmatpush.xpose.msra.mxu0 %v359
        %v361 = vand.u32 %v284, 4294901760
        %362 = vmatpush.xpose.msra.mxu0 %v361
        %v363 = vand.u32 %v278, 4294901760
        %v364 = vsub.f32 %v278, %v363
        %v365 = vand.u32 %v364, 4294901760
        %v366 = vsub.f32 %v364, %v365
        %v367 = vand.u32 %v366, 4294901760
        %368 = vmatmul.f32.gmra.mxu0 %v367
        %v369 = vpop.f32.mrf.mxu0
        %v370 = vadd.f32 %v269, %v369
        %v371 = vand.u32 %v281, 4294901760
        %v372 = vsub.f32 %v281, %v371
        %v373 = vand.u32 %v372, 4294901760
        %v374 = vsub.f32 %v372, %v373
        %v375 = vand.u32 %v374, 4294901760
        %376 = vmatmul.f32.gmra.mxu0 %v375
        %v377 = vpop.f32.mrf.mxu0
        %v378 = vadd.f32 %v274, %v377
        %379 = vdwg.mxu0
        %v380 = vand.u32 %v329, 4294901760
        %v381 = vsub.f32 %v329, %v380
        %v382 = vand.u32 %v381, 4294901760
        %v383 = vsub.f32 %v381, %v382
        %v384 = vand.u32 %v383, 4294901760
        %385 = vmatpush.xpose.msra.mxu0 %v384
        %v386 = vand.u32 %v326, 4294901760
        %v387 = vsub.f32 %v326, %v386
        %v388 = vand.u32 %v387, 4294901760
        %v389 = vsub.f32 %v387, %v388
        %v390 = vand.u32 %v389, 4294901760
        %391 = vmatpush.xpose.msra.mxu0 %v390
        %v392 = vand.u32 %v323, 4294901760
        %v393 = vsub.f32 %v323, %v392
        %v394 = vand.u32 %v393, 4294901760
        %v395 = vsub.f32 %v393, %v394
        %v396 = vand.u32 %v395, 4294901760
        %397 = vmatpush.xpose.msra.mxu0 %v396
        %v398 = vand.u32 %v320, 4294901760
        %v399 = vsub.f32 %v320, %v398
        %v400 = vand.u32 %v399, 4294901760
        %v401 = vsub.f32 %v399, %v400
        %v402 = vand.u32 %v401, 4294901760
        %403 = vmatpush.xpose.msra.mxu0 %v402
        %v404 = vand.u32 %v317, 4294901760
        %v405 = vsub.f32 %v317, %v404
        %v406 = vand.u32 %v405, 4294901760
        %v407 = vsub.f32 %v405, %v406
        %v408 = vand.u32 %v407, 4294901760
        %409 = vmatpush.xpose.msra.mxu0 %v408
        %v410 = vand.u32 %v314, 4294901760
        %v411 = vsub.f32 %v314, %v410
        %v412 = vand.u32 %v411, 4294901760
        %v413 = vsub.f32 %v411, %v412
        %v414 = vand.u32 %v413, 4294901760
        %415 = vmatpush.xpose.msra.mxu0 %v414
        %v416 = vand.u32 %v311, 4294901760
        %v417 = vsub.f32 %v311, %v416
        %v418 = vand.u32 %v417, 4294901760
        %v419 = vsub.f32 %v417, %v418
        %v420 = vand.u32 %v419, 4294901760
        %421 = vmatpush.xpose.msra.mxu0 %v420
        %v422 = vand.u32 %v308, 4294901760
        %v423 = vsub.f32 %v308, %v422
        %v424 = vand.u32 %v423, 4294901760
        %v425 = vsub.f32 %v423, %v424
        %v426 = vand.u32 %v425, 4294901760
        %427 = vmatpush.xpose.msra.mxu0 %v426
        %v428 = vand.u32 %v305, 4294901760
        %v429 = vsub.f32 %v305, %v428
        %v430 = vand.u32 %v429, 4294901760
        %v431 = vsub.f32 %v429, %v430
        %v432 = vand.u32 %v431, 4294901760
        %433 = vmatpush.xpose.msra.mxu0 %v432
        %v434 = vand.u32 %v302, 4294901760
        %v435 = vsub.f32 %v302, %v434
        %v436 = vand.u32 %v435, 4294901760
        %v437 = vsub.f32 %v435, %v436
        %v438 = vand.u32 %v437, 4294901760
        %439 = vmatpush.xpose.msra.mxu0 %v438
        %v440 = vand.u32 %v299, 4294901760
        %v441 = vsub.f32 %v299, %v440
        %v442 = vand.u32 %v441, 4294901760
        %v443 = vsub.f32 %v441, %v442
        %v444 = vand.u32 %v443, 4294901760
        %445 = vmatpush.xpose.msra.mxu0 %v444
        %v446 = vand.u32 %v296, 4294901760
        %v447 = vsub.f32 %v296, %v446
        %v448 = vand.u32 %v447, 4294901760
        %v449 = vsub.f32 %v447, %v448
        %v450 = vand.u32 %v449, 4294901760
        %451 = vmatpush.xpose.msra.mxu0 %v450
        %v452 = vand.u32 %v293, 4294901760
        %v453 = vsub.f32 %v293, %v452
        %v454 = vand.u32 %v453, 4294901760
        %v455 = vsub.f32 %v453, %v454
        %v456 = vand.u32 %v455, 4294901760
        %457 = vmatpush.xpose.msra.mxu0 %v456
        %v458 = vand.u32 %v290, 4294901760
        %v459 = vsub.f32 %v290, %v458
        %v460 = vand.u32 %v459, 4294901760
        %v461 = vsub.f32 %v459, %v460
        %v462 = vand.u32 %v461, 4294901760
        %463 = vmatpush.xpose.msra.mxu0 %v462
        %v464 = vand.u32 %v287, 4294901760
        %v465 = vsub.f32 %v287, %v464
        %v466 = vand.u32 %v465, 4294901760
        %v467 = vsub.f32 %v465, %v466
        %v468 = vand.u32 %v467, 4294901760
        %469 = vmatpush.xpose.msra.mxu0 %v468
        %v470 = vand.u32 %v284, 4294901760
        %v471 = vsub.f32 %v284, %v470
        %v472 = vand.u32 %v471, 4294901760
        %v473 = vsub.f32 %v471, %v472
        %v474 = vand.u32 %v473, 4294901760
        %475 = vmatpush.xpose.msra.mxu0 %v474
        %v476 = vand.u32 %v278, 4294901760
        %477 = vmatmul.f32.gmra.mxu0 %v476
        %v478 = vpop.f32.mrf.mxu0
        %v479 = vadd.f32 %v370, %v478
        %v480 = vand.u32 %v281, 4294901760
        %481 = vmatmul.f32.gmra.mxu0 %v480
        %v482 = vpop.f32.mrf.mxu0
        %v483 = vadd.f32 %v378, %v482
        %484 = vdwg.mxu0
        %v485 = vand.u32 %v329, 4294901760
        %v486 = vsub.f32 %v329, %v485
        %487 = vmatpush.xpose.msra.mxu0 %v486
        %v488 = vand.u32 %v326, 4294901760
        %v489 = vsub.f32 %v326, %v488
        %490 = vmatpush.xpose.msra.mxu0 %v489
        %v491 = vand.u32 %v323, 4294901760
        %v492 = vsub.f32 %v323, %v491
        %493 = vmatpush.xpose.msra.mxu0 %v492
        %v494 = vand.u32 %v320, 4294901760
        %v495 = vsub.f32 %v320, %v494
        %496 = vmatpush.xpose.msra.mxu0 %v495
        %v497 = vand.u32 %v317, 4294901760
        %v498 = vsub.f32 %v317, %v497
        %499 = vmatpush.xpose.msra.mxu0 %v498
        %v500 = vand.u32 %v314, 4294901760
        %v501 = vsub.f32 %v314, %v500
        %502 = vmatpush.xpose.msra.mxu0 %v501
        %v503 = vand.u32 %v311, 4294901760
        %v504 = vsub.f32 %v311, %v503
        %505 = vmatpush.xpose.msra.mxu0 %v504
        %v506 = vand.u32 %v308, 4294901760
        %v507 = vsub.f32 %v308, %v506
        %508 = vmatpush.xpose.msra.mxu0 %v507
        %v509 = vand.u32 %v305, 4294901760
        %v510 = vsub.f32 %v305, %v509
        %511 = vmatpush.xpose.msra.mxu0 %v510
        %v512 = vand.u32 %v302, 4294901760
        %v513 = vsub.f32 %v302, %v512
        %514 = vmatpush.xpose.msra.mxu0 %v513
        %v515 = vand.u32 %v299, 4294901760
        %v516 = vsub.f32 %v299, %v515
        %517 = vmatpush.xpose.msra.mxu0 %v516
        %v518 = vand.u32 %v296, 4294901760
        %v519 = vsub.f32 %v296, %v518
        %520 = vmatpush.xpose.msra.mxu0 %v519
        %v521 = vand.u32 %v293, 4294901760
        %v522 = vsub.f32 %v293, %v521
        %523 = vmatpush.xpose.msra.mxu0 %v522
        %v524 = vand.u32 %v290, 4294901760
        %v525 = vsub.f32 %v290, %v524
        %526 = vmatpush.xpose.msra.mxu0 %v525
        %v527 = vand.u32 %v287, 4294901760
        %v528 = vsub.f32 %v287, %v527
        %529 = vmatpush.xpose.msra.mxu0 %v528
        %v530 = vand.u32 %v284, 4294901760
        %v531 = vsub.f32 %v284, %v530
        %532 = vmatpush.xpose.msra.mxu0 %v531
        %v533 = vand.u32 %v278, 4294901760
        %v534 = vsub.f32 %v278, %v533
        %535 = vmatmul.f32.gmra.mxu0 %v534
        %v536 = vpop.f32.mrf.mxu0
        %v537 = vadd.f32 %v479, %v536
        %v538 = vand.u32 %v281, 4294901760
        %v539 = vsub.f32 %v281, %v538
        %540 = vmatmul.f32.gmra.mxu0 %v539
        %v541 = vpop.f32.mrf.mxu0
        %v542 = vadd.f32 %v483, %v541
        %543 = vdwg.mxu0
        %v544 = vand.u32 %v329, 4294901760
        %545 = vmatpush.xpose.msra.mxu0 %v544
        %v546 = vand.u32 %v326, 4294901760
        %547 = vmatpush.xpose.msra.mxu0 %v546
        %v548 = vand.u32 %v323, 4294901760
        %549 = vmatpush.xpose.msra.mxu0 %v548
        %v550 = vand.u32 %v320, 4294901760
        %551 = vmatpush.xpose.msra.mxu0 %v550
        %v552 = vand.u32 %v317, 4294901760
        %553 = vmatpush.xpose.msra.mxu0 %v552
        %v554 = vand.u32 %v314, 4294901760
        %555 = vmatpush.xpose.msra.mxu0 %v554
        %v556 = vand.u32 %v311, 4294901760
        %557 = vmatpush.xpose.msra.mxu0 %v556
        %v558 = vand.u32 %v308, 4294901760
        %559 = vmatpush.xpose.msra.mxu0 %v558
        %v560 = vand.u32 %v305, 4294901760
        %561 = vmatpush.xpose.msra.mxu0 %v560
        %v562 = vand.u32 %v302, 4294901760
        %563 = vmatpush.xpose.msra.mxu0 %v562
        %v564 = vand.u32 %v299, 4294901760
        %565 = vmatpush.xpose.msra.mxu0 %v564
        %v566 = vand.u32 %v296, 4294901760
        %567 = vmatpush.xpose.msra.mxu0 %v566
        %v568 = vand.u32 %v293, 4294901760
        %569 = vmatpush.xpose.msra.mxu0 %v568
        %v570 = vand.u32 %v290, 4294901760
        %571 = vmatpush.xpose.msra.mxu0 %v570
        %v572 = vand.u32 %v287, 4294901760
        %573 = vmatpush.xpose.msra.mxu0 %v572
        %v574 = vand.u32 %v284, 4294901760
        %575 = vmatpush.xpose.msra.mxu0 %v574
        %v576 = vand.u32 %v278, 4294901760
        %v577 = vsub.f32 %v278, %v576
        %v578 = vand.u32 %v577, 4294901760
        %579 = vmatmul.f32.gmra.mxu0 %v578
        %v580 = vpop.f32.mrf.mxu0
        %v581 = vadd.f32 %v537, %v580
        %v582 = vand.u32 %v281, 4294901760
        %v583 = vsub.f32 %v281, %v582
        %v584 = vand.u32 %v583, 4294901760
        %585 = vmatmul.f32.gmra.mxu0 %v584
        %v586 = vpop.f32.mrf.mxu0
        %v587 = vadd.f32 %v542, %v586
        %588 = vdwg.mxu0
        %v589 = vand.u32 %v329, 4294901760
        %v590 = vsub.f32 %v329, %v589
        %v591 = vand.u32 %v590, 4294901760
        %592 = vmatpush.xpose.msra.mxu0 %v591
        %v593 = vand.u32 %v326, 4294901760
        %v594 = vsub.f32 %v326, %v593
        %v595 = vand.u32 %v594, 4294901760
        %596 = vmatpush.xpose.msra.mxu0 %v595
        %v597 = vand.u32 %v323, 4294901760
        %v598 = vsub.f32 %v323, %v597
        %v599 = vand.u32 %v598, 4294901760
        %600 = vmatpush.xpose.msra.mxu0 %v599
        %v601 = vand.u32 %v320, 4294901760
        %v602 = vsub.f32 %v320, %v601
        %v603 = vand.u32 %v602, 4294901760
        %604 = vmatpush.xpose.msra.mxu0 %v603
        %v605 = vand.u32 %v317, 4294901760
        %v606 = vsub.f32 %v317, %v605
        %v607 = vand.u32 %v606, 4294901760
        %608 = vmatpush.xpose.msra.mxu0 %v607
        %v609 = vand.u32 %v314, 4294901760
        %v610 = vsub.f32 %v314, %v609
        %v611 = vand.u32 %v610, 4294901760
        %612 = vmatpush.xpose.msra.mxu0 %v611
        %v613 = vand.u32 %v311, 4294901760
        %v614 = vsub.f32 %v311, %v613
        %v615 = vand.u32 %v614, 4294901760
        %616 = vmatpush.xpose.msra.mxu0 %v615
        %v617 = vand.u32 %v308, 4294901760
        %v618 = vsub.f32 %v308, %v617
        %v619 = vand.u32 %v618, 4294901760
        %620 = vmatpush.xpose.msra.mxu0 %v619
        %v621 = vand.u32 %v305, 4294901760
        %v622 = vsub.f32 %v305, %v621
        %v623 = vand.u32 %v622, 4294901760
        %624 = vmatpush.xpose.msra.mxu0 %v623
        %v625 = vand.u32 %v302, 4294901760
        %v626 = vsub.f32 %v302, %v625
        %v627 = vand.u32 %v626, 4294901760
        %628 = vmatpush.xpose.msra.mxu0 %v627
        %v629 = vand.u32 %v299, 4294901760
        %v630 = vsub.f32 %v299, %v629
        %v631 = vand.u32 %v630, 4294901760
        %632 = vmatpush.xpose.msra.mxu0 %v631
        %v633 = vand.u32 %v296, 4294901760
        %v634 = vsub.f32 %v296, %v633
        %v635 = vand.u32 %v634, 4294901760
        %636 = vmatpush.xpose.msra.mxu0 %v635
        %v637 = vand.u32 %v293, 4294901760
        %v638 = vsub.f32 %v293, %v637
        %v639 = vand.u32 %v638, 4294901760
        %640 = vmatpush.xpose.msra.mxu0 %v639
        %v641 = vand.u32 %v290, 4294901760
        %v642 = vsub.f32 %v290, %v641
        %v643 = vand.u32 %v642, 4294901760
        %644 = vmatpush.xpose.msra.mxu0 %v643
        %v645 = vand.u32 %v287, 4294901760
        %v646 = vsub.f32 %v287, %v645
        %v647 = vand.u32 %v646, 4294901760
        %648 = vmatpush.xpose.msra.mxu0 %v647
        %v649 = vand.u32 %v284, 4294901760
        %v650 = vsub.f32 %v284, %v649
        %v651 = vand.u32 %v650, 4294901760
        %652 = vmatpush.xpose.msra.mxu0 %v651
        %v653 = vand.u32 %v278, 4294901760
        %654 = vmatmul.f32.gmra.mxu0 %v653
        %v655 = vpop.f32.mrf.mxu0
        %v656 = vadd.f32 %v581, %v655
        %v657 = vand.u32 %v281, 4294901760
        %658 = vmatmul.f32.gmra.mxu0 %v657
        %v659 = vpop.f32.mrf.mxu0
        %v660 = vadd.f32 %v587, %v659
        %661 = vdwg.mxu0
        %v662 = vand.u32 %v329, 4294901760
        %663 = vmatpush.xpose.msra.mxu0 %v662
        %v664 = vand.u32 %v326, 4294901760
        %665 = vmatpush.xpose.msra.mxu0 %v664
        %v666 = vand.u32 %v323, 4294901760
        %667 = vmatpush.xpose.msra.mxu0 %v666
        %v668 = vand.u32 %v320, 4294901760
        %669 = vmatpush.xpose.msra.mxu0 %v668
        %v670 = vand.u32 %v317, 4294901760
        %671 = vmatpush.xpose.msra.mxu0 %v670
        %v672 = vand.u32 %v314, 4294901760
        %673 = vmatpush.xpose.msra.mxu0 %v672
        %v674 = vand.u32 %v311, 4294901760
        %675 = vmatpush.xpose.msra.mxu0 %v674
        %v676 = vand.u32 %v308, 4294901760
        %677 = vmatpush.xpose.msra.mxu0 %v676
        %v678 = vand.u32 %v305, 4294901760
        %679 = vmatpush.xpose.msra.mxu0 %v678
        %v680 = vand.u32 %v302, 4294901760
        %681 = vmatpush.xpose.msra.mxu0 %v680
        %v682 = vand.u32 %v299, 4294901760
        %683 = vmatpush.xpose.msra.mxu0 %v682
        %v684 = vand.u32 %v296, 4294901760
        %685 = vmatpush.xpose.msra.mxu0 %v684
        %v686 = vand.u32 %v293, 4294901760
        %687 = vmatpush.xpose.msra.mxu0 %v686
        %v688 = vand.u32 %v290, 4294901760
        %689 = vmatpush.xpose.msra.mxu0 %v688
        %v690 = vand.u32 %v287, 4294901760
        %691 = vmatpush.xpose.msra.mxu0 %v690
        %v692 = vand.u32 %v284, 4294901760
        %693 = vmatpush.xpose.msra.mxu0 %v692
        %v694 = vand.u32 %v278, 4294901760
        %695 = vmatmul.f32.gmra.mxu0 %v694
        %v696 = vpop.f32.mrf.mxu0
        %v697 = vadd.f32 %v656, %v696
        %v698 = vand.u32 %v281, 4294901760
        %699 = vmatmul.f32.gmra.mxu0 %v698
        %v700 = vpop.f32.mrf.mxu0
        %v701 = vadd.f32 %v660, %v700
        %702 = vdwg.mxu0
        %v703 = vmax.f32 %v697, 0.0
        %v704 = vmax.f32 %v701, 0.0
        %v705 = vld [vmem:[%s3] sm:$0xff]
        %v706 = vld [vmem:[%s3 + $0x8] sm:$0x3]
        %708 = vset.pattern.permute.xlu0 0
        %709 = vperm.xlu0 %708, %v705
        %v710 = vpop.permute.xlu0 %709
        %713 = vset.pattern.permute.xlu0 0
        %714 = vperm.xlu0 %713, %v706
        %v715 = vpop.permute.xlu0 %714
        %v717 = vmul.f32 %v703, %v710
        %v718 = vmul.f32 %v704, %v715
        %vm719 = vcmask 1041408
        %v720 = vsel %vm719, %v718, 0.0
        %v721 = vadd.f32 %v717, %v720
        %v722 = vrot.slane %v721, 4
        %v723 = vadd.f32 %v721, %v722
        %v724 = vrot.slane %v723, 2
        %v725 = vadd.f32 %v723, %v724
        %v726 = vrot.slane %v725, 1
        %v727 = vadd.f32 %v725, %v726
        %v728 = vld [vmem:[#allocation2] sm:$0x1]
        %730 = vset.pattern.permute.xlu0 0
        %731 = vperm.xlu0 %730, %v728
        %v732 = vpop.permute.xlu0 %731
        %v734 = vperm.slane %v732, 0
        %v735 = vadd.f32 %v727, %v734
        %736 = vst [vmem:[%s231] sm:$0x1] %v735
        %s737 = sand.u32 %s139, 1
        %s738 = scalar_lea.sflag [#allocation4], %s737
        %s739 = sand.u32 %s139, 1
        %s740 = scalar_lea.vmem [#allocation3], %s739
        // Predicated region
        $region41: #{net_forward.1} parent=39 // pred_check
          %p741 = pneg %p149
        $region42: #{net_forward.1} parent=39 // pred_check_branch
          %743 = sbr.rel (%p741) target = $region44
        $region43: #{net_forward.1} parent=39 // pred_region
          %745 = vsyncadd %s738, 0
          %s746 = scalar_lea.hbm %s5, %s21
          %s748 = sshll.u32 %s740, 4
          %s749 = int_to_ptr.vmem [resolvable:$true] %s748
          %s750 = sshll.u32 %s746, 4
          %s751 = int_to_ptr.hbm [resolvable:$true] %s750
          %753 = dma.vmem_to_hbm [thread:$0]  %s749, 16, %s751, %s738
        $region44: #{net_forward.1} parent=39 // pred_fallthru
          _
      $region40: #{net_forward.1} parent=5 // pred_fallthru
        _
      %p754 = scmp.le.s32.totalorder 2, %s16
      // Predicated region
      $region45: #{net_forward.1} parent=5 // pred_check
        %p755 = pneg %p754
      $region46: #{net_forward.1} parent=5 // pred_check_branch
        %757 = sbr.rel (%p755) target = $region48
      $region47: #{net_forward.1} parent=5 // pred_region
        %s758 = ssub.s32 %s16, 2
        // Predicated region
        $region49: #{net_forward.1} parent=47 // pred_check
          %p759 = pneg %p155
        $region50: #{net_forward.1} parent=47 // pred_check_branch
          %761 = sbr.rel (%p759) target = $region52
        $region51: #{net_forward.1} parent=47 // pred_region
          %s762 = sand.u32 %s140, 1
          %s763 = scalar_lea.sflag [#allocation4], %s762
          %s764 = sand.u32 %s140, 1
          %s765 = scalar_lea.vmem [#allocation3], %s764
          %767 = dma.done %s763, 16
        $region52: #{net_forward.1} parent=47 // pred_fallthru
          _
      $region48: #{net_forward.1} parent=5 // pred_fallthru
        _
    $region6: #{net_forward.1} parent=1 // loop_footer
      %s20 = sadd.s32 1, %s16
    $region7: #{net_forward.1} parent=1 // loop_footer_branch
      %15 = sbr.rel target = $region3
    $region8: #{net_forward.1} parent=1 // loop_exit
      _
    %768 = vsyncpa [#allocation4], 1
    %s769 = scalar_lea.sflag [#allocation4], 1
    %770 = vsyncpa %s769, 1

</llo_original>
